<compile_context>
chip_gen: v6e
topology: v6e:2x2x1
jax: 0.10.0
libtpu: 0.0.40
codegen_flags: <defaults>
</compile_context>

<pallas_src>
import functools

import jax
import jax.numpy as jnp
from jax import lax
from jax.experimental import pallas as pl
from jax.experimental.pallas import tpu as pltpu


def _round_up(x, m):
    return ((x + m - 1) // m) * m


def _vmem_limit_bytes():
    cap = 128 * 1024 * 1024
    try:
        cap = int(getattr(pltpu.get_tpu_info(), "vmem_capacity_bytes", cap))
    except Exception:
        pass
    # v7x: 64 MiB VMEM per TensorCore -> leave headroom; v5e/v6e: 128 MiB.
    if cap <= 64 * 1024 * 1024:
        return 48 * 1024 * 1024
    return 64 * 1024 * 1024


def _ppo_clip_kernel(logits_ref, onehot_ref, old_p_ref, adv_ref, out_ref,
                     probas_hi_ref, probas_lo_ref, *,
                     reduction, eps_clip, eps_ratio, n, tm, tn, mask_cols):
    j = pl.program_id(0)   # loss-matrix columns (probas rows); outer, "parallel"
    i = pl.program_id(1)   # loss-matrix rows (batch rows); inner, "arbitrary"

    # ---- softmax of this j-tile, computed ONCE per j-tile and cached in VMEM
    # as a bf16 hi/lo pair (recombined through two bf16 MXU matmuls this keeps
    # ~2^-18 relative accuracy while avoiding the f32 matmul emulation tax).
    @pl.when(i == 0)
    def _():
        lg = logits_ref[...].astype(jnp.float32)                      # (tn, A)
        mx = jnp.max(lg, axis=-1, keepdims=True)
        e = jnp.exp(lg - mx)
        denom = jnp.sum(e, axis=-1, keepdims=True)
        p = e * pl.reciprocal(denom, approx=False)                    # exact recip
        hi = p.astype(jnp.bfloat16)
        probas_hi_ref[...] = hi
        probas_lo_ref[...] = (p - hi.astype(jnp.float32)).astype(jnp.bfloat16)

    # ---- gather probas[j, a_i] = one_hot(a_i) @ probas_j^T : bf16 MXU, f32 acc
    oh = onehot_ref[...]                                              # (tm, A) bf16
    dn = (((1,), (1,)), ((), ()))
    new_p = lax.dot_general(oh, probas_hi_ref[...], dimension_numbers=dn,
                            preferred_element_type=jnp.float32)      # (tm, tn)
    new_p = new_p + lax.dot_general(oh, probas_lo_ref[...], dimension_numbers=dn,
                                    preferred_element_type=jnp.float32)

    # ---- PPO clipped objective ----------------------------------------------
    old_p = old_p_ref[...].astype(jnp.float32)                        # (tm, 1)
    neg_adv = -(adv_ref[...].astype(jnp.float32))                     # (tm, 1)
    inv_old = pl.reciprocal(old_p + eps_ratio, approx=False)          # (tm, 1)
    ratio = new_p * inv_old                                           # (tm, tn)
    clipped = jnp.clip(ratio, 1.0 - eps_clip, 1.0 + eps_clip)
    # -min(r*adv, c*adv) == max(r*(-adv), c*(-adv)); negation stays (tm, 1).
    losses = jnp.maximum(ratio * neg_adv, clipped * neg_adv)          # (tm, tn)

    if reduction == 'none':
        out_ref[...] = losses.astype(out_ref.dtype)
        return

    # ---- fused reduction: fold the (tm, tn) tile down to one (8, tn) vreg row
    # with pure VALU adds and accumulate it into the per-j output block.  All
    # cross-lane/sublane reduction is deferred to a tiny jnp.sum outside the
    # kernel.  Padded rows contribute exact zeros (advantages padded with 0),
    # so no row mask is needed.
    partial = losses[0:8, :]
    for r in range(1, tm // 8):
        partial = partial + losses[8 * r:8 * (r + 1), :]

    @pl.when(i == 0)
    def _():
        out_ref[...] = jnp.zeros_like(out_ref)

    out_ref[...] += partial

    if mask_cols:  # static flag: only emitted when the j axis is padded
        @pl.when(i == pl.num_programs(1) - 1)
        def _():
            col_g = j * tn + lax.broadcasted_iota(jnp.int32, (8, tn), 1)
            out_ref[...] = jnp.where(col_g < n, out_ref[...], 0.0)


def ppo_clip_loss(logits, action_indices, action_probas, advantages,
                  reduction='mean', epsilon_clip=0.2, epsilon_proba_ratio=1e-6,
                  tile_m=512, tile_n=1024):
    if reduction not in {'none', 'mean', 'sum'}:
        raise ValueError(
            f"`reduction` must be one of {{'none','mean','sum'}}, got {reduction}")
    n, n_actions = logits.shape

    # i tiles (loss rows): multiple of 16 (bf16-friendly sublanes for one_hot);
    # j tiles (loss columns = output lane axis): multiple of 128 (unmasked vst).
    tm = min(_round_up(tile_m, 16), _round_up(n, 16))
    tn = min(_round_up(tile_n, 128), _round_up(n, 128))
    n_pad_i = _round_up(n, tm)
    n_pad_j = _round_up(n, tn)
    j_tiles = n_pad_j // tn
    i_tiles = n_pad_i // tm
    grid = (j_tiles, i_tiles)   # j outer ("parallel"), i inner ("arbitrary")

    # One-hot of the taken actions, hoisted out of the grid and built directly
    # in bf16 (0/1 exact) so the kernel feeds the MXU with no per-step
    # iota/cmp/select work.
    idx = action_indices.astype(jnp.int32).reshape(n, 1)
    one_hot = (jnp.arange(n_actions, dtype=jnp.int32)[None, :] == idx
               ).astype(jnp.bfloat16)

    # Pad the batch dimensions only.  advantages/old probas pad with 0, so the
    # padded rows contribute exactly 0 to the loss (no in-kernel row mask).
    logits_p = jnp.pad(logits, ((0, n_pad_j - n), (0, 0)))
    one_hot_p = jnp.pad(one_hot, ((0, n_pad_i - n), (0, 0)))
    old_p_p = jnp.pad(action_probas, ((0, n_pad_i - n), (0, 0)))
    adv_p = jnp.pad(advantages, ((0, n_pad_i - n), (0, 0)))

    kernel = functools.partial(
        _ppo_clip_kernel,
        reduction=reduction,
        eps_clip=float(epsilon_clip),
        eps_ratio=float(epsilon_proba_ratio),
        n=n, tm=tm, tn=tn, mask_cols=(n_pad_j != n),
    )

    if reduction == 'none':
        out_shape = jax.ShapeDtypeStruct((n_pad_i, n_pad_j), jnp.float32)
        out_spec = pl.BlockSpec((tm, tn), lambda j, i: (i, j))
    else:
        # Lane-dense per-j-tile partial sums: lets megacore (v7x) split the j
        # axis across both TensorCores and defers the final reduction to a tiny
        # jnp.sum outside the kernel.
        out_shape = jax.ShapeDtypeStruct((8 * j_tiles, tn), jnp.float32)
        out_spec = pl.BlockSpec((8, tn), lambda j, i: (j, 0))

    flops = (2 * 2 * n_pad_i * n_pad_j * n_actions   # two bf16 gather matmuls
             + 7 * n_pad_i * n_pad_j                 # elementwise PPO math
             + 5 * n_pad_j * n_actions)              # softmax (non-exp)
    bytes_accessed = (4 * n_pad_j * n_actions + 2 * n_pad_i * n_actions
                      + 8 * n_pad_i
                      + (4 * n_pad_i * n_pad_j if reduction == 'none'
                         else 4 * 8 * j_tiles * tn))

    out = pl.pallas_call(
        kernel,
        out_shape=out_shape,
        grid_spec=pltpu.PrefetchScalarGridSpec(
            num_scalar_prefetch=0,
            grid=grid,
            in_specs=[
                pl.BlockSpec((tn, n_actions), lambda j, i: (j, 0)),   # logits (j-tile)
                pl.BlockSpec((tm, n_actions), lambda j, i: (i, 0)),   # bf16 one-hot (i-tile)
                pl.BlockSpec((tm, 1), lambda j, i: (i, 0)),           # old action probas
                pl.BlockSpec((tm, 1), lambda j, i: (i, 0)),           # advantages
            ],
            out_specs=out_spec,
            scratch_shapes=[
                pltpu.VMEM((tn, n_actions), jnp.bfloat16),   # cached softmax (hi)
                pltpu.VMEM((tn, n_actions), jnp.bfloat16),   # cached softmax (lo)
            ],
        ),
        compiler_params=pltpu.CompilerParams(
            dimension_semantics=("parallel", "arbitrary"),
            vmem_limit_bytes=_vmem_limit_bytes(),
        ),
        cost_estimate=pl.CostEstimate(
            flops=int(flops),
            transcendentals=int(n_pad_j * n_actions),
            bytes_accessed=int(bytes_accessed),
        ),
    )(logits_p, one_hot_p, old_p_p, adv_p)

    if reduction == 'none':
        if n_pad_i == n and n_pad_j == n:
            return out
        # TODO(synk): ragged-edge masked stores would avoid this extra N^2 copy
        # on the store-bound 'none' path (matters most on v5e).
        return out[:n, :n]

    total = jnp.sum(out)                 # tiny (8*j_tiles, tn) partials -> scalar
    if reduction == 'mean':
        total = total * (1.0 / float(n * n))
    return total


def _reference(logits, action_indices, action_probas, advantages,
               reduction='mean', epsilon_clip=0.2, epsilon_proba_ratio=1e-6):
    """Pure-JAX transcription of the literal PyTorch forward (for verification)."""
    probas = jax.nn.softmax(logits.astype(jnp.float32), axis=-1)
    a = action_indices[:, 0]
    new_p = probas[:, a].T                                  # (N, N): [i, j] = probas[j, a_i]
    ratio = new_p / (action_probas + epsilon_proba_ratio)
    clipped = jnp.clip(ratio, 1.0 - epsilon_clip, 1.0 + epsilon_clip)
    losses = -jnp.minimum(ratio * advantages, clipped * advantages)
    if reduction == 'none':
        return losses
    return jnp.mean(losses) if reduction == 'mean' else jnp.sum(losses)


if __name__ == "__main__":
    ok = True
    # Case A: tiny single-tile grid.  Case B: multi-tile grid (forced small
    # tiles) exercising the cached softmax, padding, column masking, per-j
    # partial accumulation and the one-hot hoist.
    for (N, N_ACTIONS, tile_m, tile_n) in ((8, 128, 256, 256), (200, 128, 64, 128)):
        key = jax.random.PRNGKey(0)
        k1, k2, k3, k4 = jax.random.split(key, 4)
        logits = jax.random.normal(k1, (N, N_ACTIONS), dtype=jnp.float32)
        action_indices = jax.random.randint(k2, (N, 1), 0, N_ACTIONS, dtype=jnp.int32)
        action_probas = jax.random.uniform(k3, (N, 1), dtype=jnp.float32,
                                           minval=0.01, maxval=1.0)
        advantages = jax.random.normal(k4, (N, 1), dtype=jnp.float32)

        for reduction in ('mean', 'sum', 'none'):
            out = ppo_clip_loss(logits, action_indices, action_probas, advantages,
                                reduction=reduction, tile_m=tile_m, tile_n=tile_n)
            out = jax.block_until_ready(out)
            ref = _reference(logits, action_indices, action_probas, advantages,
                             reduction=reduction)
            # Extra absolute slack for the un-normalized 'sum': accumulation
            # order and the bf16 hi/lo gather differ slightly from the
            # monolithic f32 reference.
            atol = 1e-5 + (3e-7 * N * N if reduction == 'sum' else 0.0)
            if not bool(jnp.allclose(out, ref, rtol=1e-5, atol=atol)):
                ok = False
                print(f"MISMATCH N={N} reduction={reduction}: kernel={out} ref={ref}")

    if ok:
        print("KERNEL_OK")
</pallas_src>

<mosaic_0001>
module attributes {stable_mosaic.version = 11 : i64} {
  func.func @_ppo_clip_kernel(%arg0: i32, %arg1: i32, %arg2: memref<128x128xf32, #tpu.memory_space<vmem>>, %arg3: memref<16x128xbf16, #tpu.memory_space<vmem>>, %arg4: memref<16x1xf32, #tpu.memory_space<vmem>>, %arg5: memref<16x1xf32, #tpu.memory_space<vmem>>, %arg6: memref<8x128xf32, #tpu.memory_space<vmem>>, %arg7: memref<128x128xbf16, #tpu.memory_space<vmem>>, %arg8: memref<128x128xbf16, #tpu.memory_space<vmem>>) attributes {dimension_semantics = [#tpu.dimension_semantics<parallel>, #tpu.dimension_semantics<arbitrary>], iteration_bounds = array<i64: 1, 1>, scalar_prefetch = 0 : i64, scratch_operands = 2 : i64, tpu.core_type = #tpu.core_type<tc>, window_params = [{transform_indices = @transform_0, window_bounds = array<i64: 128, 128>}, {transform_indices = @transform_1, window_bounds = array<i64: 16, 128>}, {transform_indices = @transform_2, window_bounds = array<i64: 16, 1>}, {transform_indices = @transform_3, window_bounds = array<i64: 16, 1>}, {transform_indices = @transform_4, window_bounds = array<i64: 8, 128>}]} {
    %c0_i32 = arith.constant 0 : i32
    %0 = arith.cmpi eq, %arg1, %c0_i32 : i32
    %1 = arith.extui %0 : i1 to i32
    %c0_i32_0 = arith.constant 0 : i32
    %2 = arith.cmpi ne, %1, %c0_i32_0 : i32
    scf.if %2 {
      %c0_23 = arith.constant 0 : index
      %c0_24 = arith.constant 0 : index
      %39 = vector.load %arg2[%c0_23, %c0_24] : memref<128x128xf32, #tpu.memory_space<vmem>>, vector<128x128xf32>
      %cst_25 = arith.constant dense<0xFF800000> : vector<128xf32>
      %40 = vector.multi_reduction <maximumf>, %39, %cst_25 [1] : vector<128x128xf32> to vector<128xf32>
      %41 = vector.shape_cast %40 : vector<128xf32> to vector<128x1xf32>
      %42 = vector.broadcast %41 : vector<128x1xf32> to vector<128x128xf32>
      %43 = arith.subf %39, %42 : vector<128x128xf32>
      %44 = math.exp %43 : vector<128x128xf32>
      %cst_26 = arith.constant dense<0.000000e+00> : vector<128xf32>
      %45 = vector.multi_reduction <add>, %44, %cst_26 [1] : vector<128x128xf32> to vector<128xf32>
      %46 = vector.shape_cast %45 : vector<128xf32> to vector<128x1xf32>
      %47 = tpu.reciprocal %46 : vector<128x1xf32> -> vector<128x1xf32>
      %48 = vector.broadcast %47 : vector<128x1xf32> to vector<128x128xf32>
      %49 = arith.mulf %44, %48 : vector<128x128xf32>
      %50 = arith.truncf %49 : vector<128x128xf32> to vector<128x128xbf16>
      %c0_27 = arith.constant 0 : index
      %c0_28 = arith.constant 0 : index
      %51 = vector.load %arg7[%c0_27, %c0_28] : memref<128x128xbf16, #tpu.memory_space<vmem>>, vector<128x128xbf16>
      tpu.vector_store %arg7[%c0_27, %c0_28], %50 {strides = array<i32>} : memref<128x128xbf16, #tpu.memory_space<vmem>>, vector<128x128xbf16>,
      %52 = arith.extf %50 : vector<128x128xbf16> to vector<128x128xf32>
      %53 = arith.subf %49, %52 : vector<128x128xf32>
      %54 = arith.truncf %53 : vector<128x128xf32> to vector<128x128xbf16>
      %c0_29 = arith.constant 0 : index
      %c0_30 = arith.constant 0 : index
      %55 = vector.load %arg8[%c0_29, %c0_30] : memref<128x128xbf16, #tpu.memory_space<vmem>>, vector<128x128xbf16>
      tpu.vector_store %arg8[%c0_29, %c0_30], %54 {strides = array<i32>} : memref<128x128xbf16, #tpu.memory_space<vmem>>, vector<128x128xbf16>,
    } else {
    }
    %c0 = arith.constant 0 : index
    %c0_1 = arith.constant 0 : index
    %3 = vector.load %arg3[%c0, %c0_1] : memref<16x128xbf16, #tpu.memory_space<vmem>>, vector<16x128xbf16>
    %c0_2 = arith.constant 0 : index
    %c0_3 = arith.constant 0 : index
    %4 = vector.load %arg7[%c0_2, %c0_3] : memref<128x128xbf16, #tpu.memory_space<vmem>>, vector<128x128xbf16>
    %cst = arith.constant dense<0.000000e+00> : vector<16x128xf32>
    %5 = tpu.matmul %3, %4, %cst {dimension_numbers = #tpu.dot_dimension_numbers<[1], [1], [0], [0], [0, 0, 1, 0], [], []>} : vector<16x128xbf16>, vector<128x128xbf16>, vector<16x128xf32> -> vector<16x128xf32>
    %c0_4 = arith.constant 0 : index
    %c0_5 = arith.constant 0 : index
    %6 = vector.load %arg8[%c0_4, %c0_5] : memref<128x128xbf16, #tpu.memory_space<vmem>>, vector<128x128xbf16>
    %cst_6 = arith.constant dense<0.000000e+00> : vector<16x128xf32>
    %7 = tpu.matmul %3, %6, %cst_6 {dimension_numbers = #tpu.dot_dimension_numbers<[1], [1], [0], [0], [0, 0, 1, 0], [], []>} : vector<16x128xbf16>, vector<128x128xbf16>, vector<16x128xf32> -> vector<16x128xf32>
    %8 = arith.addf %5, %7 : vector<16x128xf32>
    %c0_7 = arith.constant 0 : index
    %c0_8 = arith.constant 0 : index
    %9 = vector.load %arg4[%c0_7, %c0_8] : memref<16x1xf32, #tpu.memory_space<vmem>>, vector<16x1xf32>
    %c0_9 = arith.constant 0 : index
    %c0_10 = arith.constant 0 : index
    %10 = vector.load %arg5[%c0_9, %c0_10] : memref<16x1xf32, #tpu.memory_space<vmem>>, vector<16x1xf32>
    %cst_11 = arith.constant 0.000000e+00 : f32
    %11 = vector.broadcast %cst_11 : f32 to vector<16x1xf32>
    %12 = arith.subf %11, %10 : vector<16x1xf32>
    %cst_12 = arith.constant 9.99999997E-7 : f32
    %13 = vector.broadcast %cst_12 : f32 to vector<16x1xf32>
    %14 = arith.addf %9, %13 : vector<16x1xf32>
    %15 = tpu.reciprocal %14 : vector<16x1xf32> -> vector<16x1xf32>
    %16 = vector.broadcast %15 : vector<16x1xf32> to vector<16x128xf32>
    %17 = arith.mulf %8, %16 : vector<16x128xf32>
    %cst_13 = arith.constant 8.000000e-01 : f32
    %cst_14 = arith.constant 1.200000e+00 : f32
    %18 = vector.broadcast %cst_13 : f32 to vector<16x128xf32>
    %19 = arith.maximumf %18, %17 : vector<16x128xf32>
    %20 = vector.broadcast %cst_14 : f32 to vector<16x128xf32>
    %21 = arith.minimumf %20, %19 : vector<16x128xf32>
    %22 = vector.broadcast %12 : vector<16x1xf32> to vector<16x128xf32>
    %23 = arith.mulf %17, %22 : vector<16x128xf32>
    %24 = vector.broadcast %12 : vector<16x1xf32> to vector<16x128xf32>
    %25 = arith.mulf %21, %24 : vector<16x128xf32>
    %26 = arith.maximumf %23, %25 : vector<16x128xf32>
    %27 = vector.extract_strided_slice %26 {offsets = [0, 0], sizes = [8, 128], strides = [1, 1]} : vector<16x128xf32> to vector<8x128xf32>
    %28 = vector.extract_strided_slice %26 {offsets = [8, 0], sizes = [8, 128], strides = [1, 1]} : vector<16x128xf32> to vector<8x128xf32>
    %29 = arith.addf %27, %28 : vector<8x128xf32>
    %c0_i32_15 = arith.constant 0 : i32
    %30 = arith.cmpi eq, %arg1, %c0_i32_15 : i32
    %31 = arith.extui %30 : i1 to i32
    %c0_i32_16 = arith.constant 0 : i32
    %32 = arith.cmpi ne, %31, %c0_i32_16 : i32
    scf.if %32 {
      %cst_23 = arith.constant 0.000000e+00 : f32
      %39 = vector.broadcast %cst_23 : f32 to vector<8x128xf32>
      %c0_24 = arith.constant 0 : index
      %c0_25 = arith.constant 0 : index
      %40 = vector.load %arg6[%c0_24, %c0_25] : memref<8x128xf32, #tpu.memory_space<vmem>>, vector<8x128xf32>
      tpu.vector_store %arg6[%c0_24, %c0_25], %39 {strides = array<i32>} : memref<8x128xf32, #tpu.memory_space<vmem>>, vector<8x128xf32>,
    } else {
    }
    %c0_17 = arith.constant 0 : index
    %c0_18 = arith.constant 0 : index
    %33 = vector.load %arg6[%c0_17, %c0_18] : memref<8x128xf32, #tpu.memory_space<vmem>>, vector<8x128xf32>
    %34 = arith.addf %33, %29 : vector<8x128xf32>
    %c0_19 = arith.constant 0 : index
    %c0_20 = arith.constant 0 : index
    %35 = vector.load %arg6[%c0_19, %c0_20] : memref<8x128xf32, #tpu.memory_space<vmem>>, vector<8x128xf32>
    tpu.vector_store %arg6[%c0_19, %c0_20], %34 {strides = array<i32>} : memref<8x128xf32, #tpu.memory_space<vmem>>, vector<8x128xf32>,
    %c0_i32_21 = arith.constant 0 : i32
    %36 = arith.cmpi eq, %arg1, %c0_i32_21 : i32
    %37 = arith.extui %36 : i1 to i32
    %c0_i32_22 = arith.constant 0 : i32
    %38 = arith.cmpi ne, %37, %c0_i32_22 : i32
    scf.if %38 {
      %c128_i32 = arith.constant 128 : i32
      %39 = arith.muli %arg0, %c128_i32 : i32
      %40 = tpu.iota {dimensions = array<i32: 1>} : vector<8x128xi32>
      %41 = vector.broadcast %39 : i32 to vector<8x128xi32>
      %42 = arith.addi %41, %40 : vector<8x128xi32>
      %c8_i32 = arith.constant 8 : i32
      %43 = vector.broadcast %c8_i32 : i32 to vector<8x128xi32>
      %44 = arith.cmpi slt, %42, %43 : vector<8x128xi32>
      %c0_23 = arith.constant 0 : index
      %c0_24 = arith.constant 0 : index
      %45 = vector.load %arg6[%c0_23, %c0_24] : memref<8x128xf32, #tpu.memory_space<vmem>>, vector<8x128xf32>
      %cst_25 = arith.constant 0.000000e+00 : f32
      %46 = vector.broadcast %cst_25 : f32 to vector<8x128xf32>
      %47 = arith.select %44, %45, %46 : vector<8x128xi1>, vector<8x128xf32>
      %c0_26 = arith.constant 0 : index
      %c0_27 = arith.constant 0 : index
      %48 = vector.load %arg6[%c0_26, %c0_27] : memref<8x128xf32, #tpu.memory_space<vmem>>, vector<8x128xf32>
      tpu.vector_store %arg6[%c0_26, %c0_27], %47 {strides = array<i32>} : memref<8x128xf32, #tpu.memory_space<vmem>>, vector<8x128xf32>,
    } else {
    }
    return
  }
  func.func @transform_0(%arg0: i32, %arg1: i32) -> (i32, i32) {
    %c0_i32 = arith.constant 0 : i32
    %c0_i32_0 = arith.constant 0 : i32
    return %arg0, %c0_i32 : i32, i32
  }
  func.func @transform_1(%arg0: i32, %arg1: i32) -> (i32, i32) {
    %c0_i32 = arith.constant 0 : i32
    %c0_i32_0 = arith.constant 0 : i32
    return %arg1, %c0_i32 : i32, i32
  }
  func.func @transform_2(%arg0: i32, %arg1: i32) -> (i32, i32) {
    %c0_i32 = arith.constant 0 : i32
    %c0_i32_0 = arith.constant 0 : i32
    return %arg1, %c0_i32 : i32, i32
  }
  func.func @transform_3(%arg0: i32, %arg1: i32) -> (i32, i32) {
    %c0_i32 = arith.constant 0 : i32
    %c0_i32_0 = arith.constant 0 : i32
    return %arg1, %c0_i32 : i32, i32
  }
  func.func @transform_4(%arg0: i32, %arg1: i32) -> (i32, i32) {
    %c0_i32 = arith.constant 0 : i32
    %c0_i32_0 = arith.constant 0 : i32
    return %arg0, %c0_i32 : i32, i32
  }
}

</mosaic_0001>

<llo_original>
// kernel: tpu_custom_call.1
$region0: #{tpu_custom_call.1}
  #allocation0 [shape = 'u32[]', space=smem, size = 0x4, offset = 0x4, fixed_abs, tag = 'smem constant byte address 0x4 - core index']
  #allocation1 [shape = 'u32[144,128]{1,0:T(1,128)}', space=vmem, size = 0x12000, scoped, tag = 'internal scratch']
  #allocation2 [shape = 'bf16[128,128]{1,0:T(8,128)(2,1)}', space=vmem, size = 0x8000, scoped, tag = 'scratch operand']
  #allocation3 [shape = 'bf16[128,128]{1,0:T(8,128)(2,1)}', space=vmem, size = 0x8000, scoped, tag = 'scratch operand']
  %s0 = inlined_call_operand.hbm [shape: f32[128,128], index: 0, kind: input, shape index: {}]
  %s1 = inlined_call_operand.vmem [shape: bf16[16,128], index: 1, kind: input, shape index: {}]
  %s2 = inlined_call_operand.vmem [shape: f32[16,1], index: 2, kind: input, shape index: {}]
  %s3 = inlined_call_operand.vmem [shape: f32[16,1], index: 3, kind: input, shape index: {}]
  %s4 = inlined_call_operand.hbm [shape: f32[8,128], index: 4, kind: output, shape index: {}]
  %s5 = sld [smem:[#allocation0]]
  $region42: #{tpu_custom_call.1} parent=0
    _
  %s7 = ssub.s32 1, %s5
  %s8 = scalar_select 0, %s7, %s5
  $region1: #{tpu_custom_call.1} parent=0
    #allocation4 [shape = 'u8[65536]{0}', space=vmem, size = 0x10000, scoped, tag = 'input window, operand 0, single buffered']
    #allocation5 [shape = 's32[1]{0}', space=sflag, size = 0x4, scoped, tag = 'scoped memory for tpu_custom_call.1']
    #allocation6 [shape = 's32[1]{0}', space=sflag, size = 0x4, scoped, tag = 'scoped memory for tpu_custom_call.1']
    #allocation7 [shape = 'u8[4096]{0}', space=vmem, size = 0x1000, scoped, tag = 'output window, operand 0, single buffered']
    %9 = vsyncpa [#allocation5], 0
    %10 = vsyncpa [#allocation6], 0
    // Predicated region
    $region2: #{tpu_custom_call.1} parent=1 // pred_check
      _
    $region3: #{tpu_custom_call.1} parent=1 // pred_check_branch
      %12 = sbr.rel (0) target = $region5
    $region4: #{tpu_custom_call.1} parent=1 // pred_region
      %s14 = ssub.s32 2048, 2048
      %15 = vsyncadd [#allocation5], %s14
      %s16 = sshll.u32 [#allocation4], 4
      %s17 = int_to_ptr.vmem [resolvable:$true] %s16
      %22 = dma.hbm_to_vmem [thread:$0]  %s0, 2048, %s17, [#allocation5], 128, 128, 8
    $region5: #{tpu_custom_call.1} parent=1 // pred_fallthru
      _
    // Predicated region
    $region6: #{tpu_custom_call.1} parent=1 // pred_check
      _
    $region7: #{tpu_custom_call.1} parent=1 // pred_check_branch
      %24 = sbr.rel (0) target = $region9
    $region8: #{tpu_custom_call.1} parent=1 // pred_region
      _
    $region9: #{tpu_custom_call.1} parent=1 // pred_fallthru
      _
    // Predicated region
    $region10: #{tpu_custom_call.1} parent=1 // pred_check
      _
    $region11: #{tpu_custom_call.1} parent=1 // pred_check_branch
      %26 = sbr.rel (0) target = $region13
    $region12: #{tpu_custom_call.1} parent=1 // pred_region
      _
    $region13: #{tpu_custom_call.1} parent=1 // pred_fallthru
      _
    // Predicated region
    $region14: #{tpu_custom_call.1} parent=1 // pred_check
      _
    $region15: #{tpu_custom_call.1} parent=1 // pred_check_branch
      %28 = sbr.rel (0) target = $region17
    $region16: #{tpu_custom_call.1} parent=1 // pred_region
      _
    $region17: #{tpu_custom_call.1} parent=1 // pred_fallthru
      _
    // Predicated region
    $region18: #{tpu_custom_call.1} parent=1 // pred_check
      _
    $region19: #{tpu_custom_call.1} parent=1 // pred_check_branch
      %30 = sbr.rel (0) target = $region21
    $region20: #{tpu_custom_call.1} parent=1 // pred_region
      %31 = dma.done [#allocation5], 2048
    $region21: #{tpu_custom_call.1} parent=1 // pred_fallthru
      _
    %p33 = scmp.eq.s32.totalorder 0, 0
    // Predicated region
    $region22: #{tpu_custom_call.1} parent=1 // pred_check
      %p34 = pneg %p33
    $region23: #{tpu_custom_call.1} parent=1 // pred_check_branch
      %36 = sbr.rel (%p34) target = $region25
    $region24: #{tpu_custom_call.1} parent=1 // pred_region
      %v37 = vld [vmem:[#allocation4] sm:$0xff]
      %v38 = vld [vmem:[#allocation4 + $0x8] sm:$0xff]
      %v39 = vld [vmem:[#allocation4 + $0x10] sm:$0xff]
      %v40 = vld [vmem:[#allocation4 + $0x18] sm:$0xff]
      %v41 = vld [vmem:[#allocation4 + $0x20] sm:$0xff]
      %v42 = vld [vmem:[#allocation4 + $0x28] sm:$0xff]
      %v43 = vld [vmem:[#allocation4 + $0x30] sm:$0xff]
      %v44 = vld [vmem:[#allocation4 + $0x38] sm:$0xff]
      %v45 = vld [vmem:[#allocation4 + $0x40] sm:$0xff]
      %v46 = vld [vmem:[#allocation4 + $0x48] sm:$0xff]
      %v47 = vld [vmem:[#allocation4 + $0x50] sm:$0xff]
      %v48 = vld [vmem:[#allocation4 + $0x58] sm:$0xff]
      %v49 = vld [vmem:[#allocation4 + $0x60] sm:$0xff]
      %v50 = vld [vmem:[#allocation4 + $0x68] sm:$0xff]
      %v51 = vld [vmem:[#allocation4 + $0x70] sm:$0xff]
      %v52 = vld [vmem:[#allocation4 + $0x78] sm:$0xff]
      %53 = vmax.xlane.f32.xlu0 %v37
      %v54 = vpop.xlane.xlu0 %53
      %55 = vmax.xlane.f32.xlu0 %v38
      %v56 = vpop.xlane.xlu0 %55
      %57 = vmax.xlane.f32.xlu0 %v39
      %v58 = vpop.xlane.xlu0 %57
      %59 = vmax.xlane.f32.xlu0 %v40
      %v60 = vpop.xlane.xlu0 %59
      %61 = vmax.xlane.f32.xlu0 %v41
      %v62 = vpop.xlane.xlu0 %61
      %63 = vmax.xlane.f32.xlu0 %v42
      %v64 = vpop.xlane.xlu0 %63
      %65 = vmax.xlane.f32.xlu0 %v43
      %v66 = vpop.xlane.xlu0 %65
      %67 = vmax.xlane.f32.xlu0 %v44
      %v68 = vpop.xlane.xlu0 %67
      %69 = vmax.xlane.f32.xlu0 %v45
      %v70 = vpop.xlane.xlu0 %69
      %71 = vmax.xlane.f32.xlu0 %v46
      %v72 = vpop.xlane.xlu0 %71
      %73 = vmax.xlane.f32.xlu0 %v47
      %v74 = vpop.xlane.xlu0 %73
      %75 = vmax.xlane.f32.xlu0 %v48
      %v76 = vpop.xlane.xlu0 %75
      %77 = vmax.xlane.f32.xlu0 %v49
      %v78 = vpop.xlane.xlu0 %77
      %79 = vmax.xlane.f32.xlu0 %v50
      %v80 = vpop.xlane.xlu0 %79
      %81 = vmax.xlane.f32.xlu0 %v51
      %v82 = vpop.xlane.xlu0 %81
      %83 = vmax.xlane.f32.xlu0 %v52
      %v84 = vpop.xlane.xlu0 %83
      %v85 = vsub.f32 %v37, %v54
      %v86 = vsub.f32 %v38, %v56
      %v87 = vsub.f32 %v39, %v58
      %v88 = vsub.f32 %v40, %v60
      %v89 = vsub.f32 %v41, %v62
      %v90 = vsub.f32 %v42, %v64
      %v91 = vsub.f32 %v43, %v66
      %v92 = vsub.f32 %v44, %v68
      %v93 = vsub.f32 %v45, %v70
      %v94 = vsub.f32 %v46, %v72
      %v95 = vsub.f32 %v47, %v74
      %v96 = vsub.f32 %v48, %v76
      %v97 = vsub.f32 %v49, %v78
      %v98 = vsub.f32 %v50, %v80
      %v99 = vsub.f32 %v51, %v82
      %v100 = vsub.f32 %v52, %v84
      %v101 = vmul.f32 %v85, 1.442695
      %v102 = vpow.pop %v101
      %v103 = vmul.f32 %v86, 1.442695
      %v104 = vpow.pop %v103
      %v105 = vmul.f32 %v87, 1.442695
      %v106 = vpow.pop %v105
      %v107 = vmul.f32 %v88, 1.442695
      %v108 = vpow.pop %v107
      %v109 = vmul.f32 %v89, 1.442695
      %v110 = vpow.pop %v109
      %v111 = vmul.f32 %v90, 1.442695
      %v112 = vpow.pop %v111
      %v113 = vmul.f32 %v91, 1.442695
      %v114 = vpow.pop %v113
      %v115 = vmul.f32 %v92, 1.442695
      %v116 = vpow.pop %v115
      %v117 = vmul.f32 %v93, 1.442695
      %v118 = vpow.pop %v117
      %v119 = vmul.f32 %v94, 1.442695
      %v120 = vpow.pop %v119
      %v121 = vmul.f32 %v95, 1.442695
      %v122 = vpow.pop %v121
      %v123 = vmul.f32 %v96, 1.442695
      %v124 = vpow.pop %v123
      %v125 = vmul.f32 %v97, 1.442695
      %v126 = vpow.pop %v125
      %v127 = vmul.f32 %v98, 1.442695
      %v128 = vpow.pop %v127
      %v129 = vmul.f32 %v99, 1.442695
      %v130 = vpow.pop %v129
      %v131 = vmul.f32 %v100, 1.442695
      %v132 = vpow.pop %v131
      %133 = vadd.xlane.f32.xlu0 %v102
      %v134 = vpop.xlane.xlu0 %133
      %135 = vadd.xlane.f32.xlu0 %v104
      %v136 = vpop.xlane.xlu0 %135
      %137 = vadd.xlane.f32.xlu0 %v106
      %v138 = vpop.xlane.xlu0 %137
      %139 = vadd.xlane.f32.xlu0 %v108
      %v140 = vpop.xlane.xlu0 %139
      %141 = vadd.xlane.f32.xlu0 %v110
      %v142 = vpop.xlane.xlu0 %141
      %143 = vadd.xlane.f32.xlu0 %v112
      %v144 = vpop.xlane.xlu0 %143
      %145 = vadd.xlane.f32.xlu0 %v114
      %v146 = vpop.xlane.xlu0 %145
      %147 = vadd.xlane.f32.xlu0 %v116
      %v148 = vpop.xlane.xlu0 %147
      %149 = vadd.xlane.f32.xlu0 %v118
      %v150 = vpop.xlane.xlu0 %149
      %151 = vadd.xlane.f32.xlu0 %v120
      %v152 = vpop.xlane.xlu0 %151
      %153 = vadd.xlane.f32.xlu0 %v122
      %v154 = vpop.xlane.xlu0 %153
      %155 = vadd.xlane.f32.xlu0 %v124
      %v156 = vpop.xlane.xlu0 %155
      %157 = vadd.xlane.f32.xlu0 %v126
      %v158 = vpop.xlane.xlu0 %157
      %159 = vadd.xlane.f32.xlu0 %v128
      %v160 = vpop.xlane.xlu0 %159
      %161 = vadd.xlane.f32.xlu0 %v130
      %v162 = vpop.xlane.xlu0 %161
      %163 = vadd.xlane.f32.xlu0 %v132
      %v164 = vpop.xlane.xlu0 %163
      %v165 = vrcp.pop %v134
      %v166 = vrcp.pop %v136
      %v167 = vrcp.pop %v138
      %v168 = vrcp.pop %v140
      %v169 = vrcp.pop %v142
      %v170 = vrcp.pop %v144
      %v171 = vrcp.pop %v146
      %v172 = vrcp.pop %v148
      %v173 = vrcp.pop %v150
      %v174 = vrcp.pop %v152
      %v175 = vrcp.pop %v154
      %v176 = vrcp.pop %v156
      %v177 = vrcp.pop %v158
      %v178 = vrcp.pop %v160
      %v179 = vrcp.pop %v162
      %v180 = vrcp.pop %v164
      %v181 = vmul.f32 %v102, %v165
      %v182 = vmul.f32 %v104, %v166
      %v183 = vmul.f32 %v106, %v167
      %v184 = vmul.f32 %v108, %v168
      %v185 = vmul.f32 %v110, %v169
      %v186 = vmul.f32 %v112, %v170
      %v187 = vmul.f32 %v114, %v171
      %v188 = vmul.f32 %v116, %v172
      %v189 = vmul.f32 %v118, %v173
      %v190 = vmul.f32 %v120, %v174
      %v191 = vmul.f32 %v122, %v175
      %v192 = vmul.f32 %v124, %v176
      %v193 = vmul.f32 %v126, %v177
      %v194 = vmul.f32 %v128, %v178
      %v195 = vmul.f32 %v130, %v179
      %v196 = vmul.f32 %v132, %v180
      %v197 = vpack.c.bf16 %v182, %v181
      %v198 = vpack.c.bf16 %v184, %v183
      %v199 = vpack.c.bf16 %v186, %v185
      %v200 = vpack.c.bf16 %v188, %v187
      %v201 = vpack.c.bf16 %v190, %v189
      %v202 = vpack.c.bf16 %v192, %v191
      %v203 = vpack.c.bf16 %v194, %v193
      %v204 = vpack.c.bf16 %v196, %v195
      %v213 = vunpack.c.l.b16 %v197
      %v214 = vunpack.c.h.b16 %v197
      %v215 = vunpack.c.l.b16 %v198
      %v216 = vunpack.c.h.b16 %v198
      %v217 = vunpack.c.l.b16 %v199
      %v218 = vunpack.c.h.b16 %v199
      %v219 = vunpack.c.l.b16 %v200
      %v220 = vunpack.c.h.b16 %v200
      %v221 = vunpack.c.l.b16 %v201
      %v222 = vunpack.c.h.b16 %v201
      %v223 = vunpack.c.l.b16 %v202
      %v224 = vunpack.c.h.b16 %v202
      %v225 = vunpack.c.l.b16 %v203
      %v226 = vunpack.c.h.b16 %v203
      %v227 = vunpack.c.l.b16 %v204
      %v228 = vunpack.c.h.b16 %v204
      %v229 = vpack.c.b16 %v213, %v213
      %v230 = vpack.c.b16 %v214, %v214
      %v231 = vpack.c.b16 %v215, %v215
      %v232 = vpack.c.b16 %v216, %v216
      %v233 = vpack.c.b16 %v217, %v217
      %v234 = vpack.c.b16 %v218, %v218
      %v235 = vpack.c.b16 %v219, %v219
      %v236 = vpack.c.b16 %v220, %v220
      %v237 = vpack.c.b16 %v221, %v221
      %v238 = vpack.c.b16 %v222, %v222
      %v239 = vpack.c.b16 %v223, %v223
      %v240 = vpack.c.b16 %v224, %v224
      %v241 = vpack.c.b16 %v225, %v225
      %v242 = vpack.c.b16 %v226, %v226
      %v243 = vpack.c.b16 %v227, %v227
      %v244 = vpack.c.b16 %v228, %v228
      %261 = vst [vmem:[#allocation2] sm:$0xf] %v229
      %262 = vst [vmem:[#allocation2 + $0x4] sm:$0xf] %v230
      %263 = vst [vmem:[#allocation2 + $0x8] sm:$0xf] %v231
      %264 = vst [vmem:[#allocation2 + $0xc] sm:$0xf] %v232
      %265 = vst [vmem:[#allocation2 + $0x10] sm:$0xf] %v233
      %266 = vst [vmem:[#allocation2 + $0x14] sm:$0xf] %v234
      %267 = vst [vmem:[#allocation2 + $0x18] sm:$0xf] %v235
      %268 = vst [vmem:[#allocation2 + $0x1c] sm:$0xf] %v236
      %269 = vst [vmem:[#allocation2 + $0x20] sm:$0xf] %v237
      %270 = vst [vmem:[#allocation2 + $0x24] sm:$0xf] %v238
      %271 = vst [vmem:[#allocation2 + $0x28] sm:$0xf] %v239
      %272 = vst [vmem:[#allocation2 + $0x2c] sm:$0xf] %v240
      %273 = vst [vmem:[#allocation2 + $0x30] sm:$0xf] %v241
      %274 = vst [vmem:[#allocation2 + $0x34] sm:$0xf] %v242
      %275 = vst [vmem:[#allocation2 + $0x38] sm:$0xf] %v243
      %276 = vst [vmem:[#allocation2 + $0x3c] sm:$0xf] %v244
      %v277 = vunpack.c.l.bf16 %v197
      %v278 = vunpack.c.h.bf16 %v197
      %v279 = vunpack.c.l.bf16 %v198
      %v280 = vunpack.c.h.bf16 %v198
      %v281 = vunpack.c.l.bf16 %v199
      %v282 = vunpack.c.h.bf16 %v199
      %v283 = vunpack.c.l.bf16 %v200
      %v284 = vunpack.c.h.bf16 %v200
      %v285 = vunpack.c.l.bf16 %v201
      %v286 = vunpack.c.h.bf16 %v201
      %v287 = vunpack.c.l.bf16 %v202
      %v288 = vunpack.c.h.bf16 %v202
      %v289 = vunpack.c.l.bf16 %v203
      %v290 = vunpack.c.h.bf16 %v203
      %v291 = vunpack.c.l.bf16 %v204
      %v292 = vunpack.c.h.bf16 %v204
      %v293 = vsub.f32 %v181, %v277
      %v294 = vsub.f32 %v182, %v278
      %v295 = vsub.f32 %v183, %v279
      %v296 = vsub.f32 %v184, %v280
      %v297 = vsub.f32 %v185, %v281
      %v298 = vsub.f32 %v186, %v282
      %v299 = vsub.f32 %v187, %v283
      %v300 = vsub.f32 %v188, %v284
      %v301 = vsub.f32 %v189, %v285
      %v302 = vsub.f32 %v190, %v286
      %v303 = vsub.f32 %v191, %v287
      %v304 = vsub.f32 %v192, %v288
      %v305 = vsub.f32 %v193, %v289
      %v306 = vsub.f32 %v194, %v290
      %v307 = vsub.f32 %v195, %v291
      %v308 = vsub.f32 %v196, %v292
      %v309 = vpack.c.bf16 %v294, %v293
      %v310 = vpack.c.bf16 %v296, %v295
      %v311 = vpack.c.bf16 %v298, %v297
      %v312 = vpack.c.bf16 %v300, %v299
      %v313 = vpack.c.bf16 %v302, %v301
      %v314 = vpack.c.bf16 %v304, %v303
      %v315 = vpack.c.bf16 %v306, %v305
      %v316 = vpack.c.bf16 %v308, %v307
      %v325 = vunpack.c.l.b16 %v309
      %v326 = vunpack.c.h.b16 %v309
      %v327 = vunpack.c.l.b16 %v310
      %v328 = vunpack.c.h.b16 %v310
      %v329 = vunpack.c.l.b16 %v311
      %v330 = vunpack.c.h.b16 %v311
      %v331 = vunpack.c.l.b16 %v312
      %v332 = vunpack.c.h.b16 %v312
      %v333 = vunpack.c.l.b16 %v313
      %v334 = vunpack.c.h.b16 %v313
      %v335 = vunpack.c.l.b16 %v314
      %v336 = vunpack.c.h.b16 %v314
      %v337 = vunpack.c.l.b16 %v315
      %v338 = vunpack.c.h.b16 %v315
      %v339 = vunpack.c.l.b16 %v316
      %v340 = vunpack.c.h.b16 %v316
      %v341 = vpack.c.b16 %v325, %v325
      %v342 = vpack.c.b16 %v326, %v326
      %v343 = vpack.c.b16 %v327, %v327
      %v344 = vpack.c.b16 %v328, %v328
      %v345 = vpack.c.b16 %v329, %v329
      %v346 = vpack.c.b16 %v330, %v330
      %v347 = vpack.c.b16 %v331, %v331
      %v348 = vpack.c.b16 %v332, %v332
      %v349 = vpack.c.b16 %v333, %v333
      %v350 = vpack.c.b16 %v334, %v334
      %v351 = vpack.c.b16 %v335, %v335
      %v352 = vpack.c.b16 %v336, %v336
      %v353 = vpack.c.b16 %v337, %v337
      %v354 = vpack.c.b16 %v338, %v338
      %v355 = vpack.c.b16 %v339, %v339
      %v356 = vpack.c.b16 %v340, %v340
      %373 = vst [vmem:[#allocation3] sm:$0xf] %v341
      %374 = vst [vmem:[#allocation3 + $0x4] sm:$0xf] %v342
      %375 = vst [vmem:[#allocation3 + $0x8] sm:$0xf] %v343
      %376 = vst [vmem:[#allocation3 + $0xc] sm:$0xf] %v344
      %377 = vst [vmem:[#allocation3 + $0x10] sm:$0xf] %v345
      %378 = vst [vmem:[#allocation3 + $0x14] sm:$0xf] %v346
      %379 = vst [vmem:[#allocation3 + $0x18] sm:$0xf] %v347
      %380 = vst [vmem:[#allocation3 + $0x1c] sm:$0xf] %v348
      %381 = vst [vmem:[#allocation3 + $0x20] sm:$0xf] %v349
      %382 = vst [vmem:[#allocation3 + $0x24] sm:$0xf] %v350
      %383 = vst [vmem:[#allocation3 + $0x28] sm:$0xf] %v351
      %384 = vst [vmem:[#allocation3 + $0x2c] sm:$0xf] %v352
      %385 = vst [vmem:[#allocation3 + $0x30] sm:$0xf] %v353
      %386 = vst [vmem:[#allocation3 + $0x34] sm:$0xf] %v354
      %387 = vst [vmem:[#allocation3 + $0x38] sm:$0xf] %v355
      %388 = vst [vmem:[#allocation3 + $0x3c] sm:$0xf] %v356
    $region25: #{tpu_custom_call.1} parent=1 // pred_fallthru
      _
    %v389 = vld [vmem:[%s1] sm:$0xf]
    %v390 = vld [vmem:[%s1 + $0x4] sm:$0xf]
    %v391 = vld [vmem:[#allocation2] sm:$0xf]
    %v392 = vld [vmem:[#allocation2 + $0x4] sm:$0xf]
    %v393 = vld [vmem:[#allocation2 + $0x8] sm:$0xf]
    %v394 = vld [vmem:[#allocation2 + $0xc] sm:$0xf]
    %v395 = vld [vmem:[#allocation2 + $0x10] sm:$0xf]
    %v396 = vld [vmem:[#allocation2 + $0x14] sm:$0xf]
    %v397 = vld [vmem:[#allocation2 + $0x18] sm:$0xf]
    %v398 = vld [vmem:[#allocation2 + $0x1c] sm:$0xf]
    %v399 = vld [vmem:[#allocation2 + $0x20] sm:$0xf]
    %v400 = vld [vmem:[#allocation2 + $0x24] sm:$0xf]
    %v401 = vld [vmem:[#allocation2 + $0x28] sm:$0xf]
    %v402 = vld [vmem:[#allocation2 + $0x2c] sm:$0xf]
    %v403 = vld [vmem:[#allocation2 + $0x30] sm:$0xf]
    %v404 = vld [vmem:[#allocation2 + $0x34] sm:$0xf]
    %v405 = vld [vmem:[#allocation2 + $0x38] sm:$0xf]
    %v406 = vld [vmem:[#allocation2 + $0x3c] sm:$0xf]
    %v407 = vld [vmem:[#allocation3] sm:$0xf]
    %v408 = vld [vmem:[#allocation3 + $0x4] sm:$0xf]
    %v409 = vld [vmem:[#allocation3 + $0x8] sm:$0xf]
    %v410 = vld [vmem:[#allocation3 + $0xc] sm:$0xf]
    %v411 = vld [vmem:[#allocation3 + $0x10] sm:$0xf]
    %v412 = vld [vmem:[#allocation3 + $0x14] sm:$0xf]
    %v413 = vld [vmem:[#allocation3 + $0x18] sm:$0xf]
    %v414 = vld [vmem:[#allocation3 + $0x1c] sm:$0xf]
    %v415 = vld [vmem:[#allocation3 + $0x20] sm:$0xf]
    %v416 = vld [vmem:[#allocation3 + $0x24] sm:$0xf]
    %v417 = vld [vmem:[#allocation3 + $0x28] sm:$0xf]
    %v418 = vld [vmem:[#allocation3 + $0x2c] sm:$0xf]
    %v419 = vld [vmem:[#allocation3 + $0x30] sm:$0xf]
    %v420 = vld [vmem:[#allocation3 + $0x34] sm:$0xf]
    %v421 = vld [vmem:[#allocation3 + $0x38] sm:$0xf]
    %v422 = vld [vmem:[#allocation3 + $0x3c] sm:$0xf]
    %v425 = vunpack.c.l.b16 %v389
    %v426 = vunpack.c.l.b16 %v390
    %v427 = vpack.c.b16 %v426, %v425
    %v445 = vunpack.c.l.b16 %v407
    %v446 = vunpack.c.l.b16 %v408
    %v447 = vunpack.c.l.b16 %v409
    %v448 = vunpack.c.l.b16 %v410
    %v449 = vunpack.c.l.b16 %v411
    %v450 = vunpack.c.l.b16 %v412
    %v451 = vunpack.c.l.b16 %v413
    %v452 = vunpack.c.l.b16 %v414
    %v453 = vunpack.c.l.b16 %v415
    %v454 = vunpack.c.l.b16 %v416
    %v455 = vunpack.c.l.b16 %v417
    %v456 = vunpack.c.l.b16 %v418
    %v457 = vunpack.c.l.b16 %v419
    %v458 = vunpack.c.l.b16 %v420
    %v459 = vunpack.c.l.b16 %v421
    %v460 = vunpack.c.l.b16 %v422
    %v461 = vpack.c.b16 %v446, %v445
    %v462 = vpack.c.b16 %v448, %v447
    %v463 = vpack.c.b16 %v450, %v449
    %v464 = vpack.c.b16 %v452, %v451
    %v465 = vpack.c.b16 %v454, %v453
    %v466 = vpack.c.b16 %v456, %v455
    %v467 = vpack.c.b16 %v458, %v457
    %v468 = vpack.c.b16 %v460, %v459
    %477 = vmatprep.subr.bf16.mxu0 0
    %478 = vmatpush1.bf16.xpose.msra.mxu0 %v468
    %479 = vmatprep.subr.bf16.mxu0 0
    %480 = vmatpush1.bf16.xpose.msra.mxu0 %v467
    %481 = vmatprep.subr.bf16.mxu0 0
    %482 = vmatpush1.bf16.xpose.msra.mxu0 %v466
    %483 = vmatprep.subr.bf16.mxu0 0
    %484 = vmatpush1.bf16.xpose.msra.mxu0 %v465
    %485 = vmatprep.subr.bf16.mxu0 0
    %486 = vmatpush1.bf16.xpose.msra.mxu0 %v464
    %487 = vmatprep.subr.bf16.mxu0 0
    %488 = vmatpush1.bf16.xpose.msra.mxu0 %v463
    %489 = vmatprep.subr.bf16.mxu0 0
    %490 = vmatpush1.bf16.xpose.msra.mxu0 %v462
    %491 = vmatprep.subr.bf16.mxu0 0
    %492 = vmatpush1.bf16.xpose.msra.mxu0 %v461
    %493 = vmatprep.subr.bf16.mxu0 0
    %494 = vmatpush2.bf16.xpose.msra.mxu0 0
    %495 = vmatprep.subr.bf16.mxu0 0
    %496 = vmatpush2.bf16.xpose.msra.mxu0 0
    %497 = vmatprep.subr.bf16.mxu0 0
    %498 = vmatpush2.bf16.xpose.msra.mxu0 0
    %499 = vmatprep.subr.bf16.mxu0 0
    %500 = vmatpush2.bf16.xpose.msra.mxu0 0
    %501 = vmatprep.subr.bf16.mxu0 0
    %502 = vmatpush2.bf16.xpose.msra.mxu0 0
    %503 = vmatprep.subr.bf16.mxu0 0
    %504 = vmatpush2.bf16.xpose.msra.mxu0 0
    %505 = vmatprep.subr.bf16.mxu0 0
    %506 = vmatpush2.bf16.xpose.msra.mxu0 0
    %507 = vmatprep.subr.bf16.mxu0 0
    %508 = vmatpush2.bf16.xpose.msra.mxu0 0
    %509 = vmatprep.mubr.bf16.mxu0 0
    %510 = vmatmul.mubr.bf16.gmra.mxu0 %v427
    %v511 = vpop.f32.mrf.mxu0
    %v512 = vadd.f32 0.0, %v511
    %v513 = vpop.f32.mrf.mxu0
    %v514 = vpop.f32.mrf.mxu0
    %v515 = vadd.f32 0.0, %v514
    %v516 = vpop.f32.mrf.mxu0
    %517 = vdwg.mxu0
    %v534 = vunpack.c.l.b16 %v391
    %v535 = vunpack.c.l.b16 %v392
    %v536 = vunpack.c.l.b16 %v393
    %v537 = vunpack.c.l.b16 %v394
    %v538 = vunpack.c.l.b16 %v395
    %v539 = vunpack.c.l.b16 %v396
    %v540 = vunpack.c.l.b16 %v397
    %v541 = vunpack.c.l.b16 %v398
    %v542 = vunpack.c.l.b16 %v399
    %v543 = vunpack.c.l.b16 %v400
    %v544 = vunpack.c.l.b16 %v401
    %v545 = vunpack.c.l.b16 %v402
    %v546 = vunpack.c.l.b16 %v403
    %v547 = vunpack.c.l.b16 %v404
    %v548 = vunpack.c.l.b16 %v405
    %v549 = vunpack.c.l.b16 %v406
    %v550 = vpack.c.b16 %v535, %v534
    %v551 = vpack.c.b16 %v537, %v536
    %v552 = vpack.c.b16 %v539, %v538
    %v553 = vpack.c.b16 %v541, %v540
    %v554 = vpack.c.b16 %v543, %v542
    %v555 = vpack.c.b16 %v545, %v544
    %v556 = vpack.c.b16 %v547, %v546
    %v557 = vpack.c.b16 %v549, %v548
    %566 = vmatprep.subr.bf16.mxu0 0
    %567 = vmatpush1.bf16.xpose.msra.mxu0 %v557
    %568 = vmatprep.subr.bf16.mxu0 0
    %569 = vmatpush1.bf16.xpose.msra.mxu0 %v556
    %570 = vmatprep.subr.bf16.mxu0 0
    %571 = vmatpush1.bf16.xpose.msra.mxu0 %v555
    %572 = vmatprep.subr.bf16.mxu0 0
    %573 = vmatpush1.bf16.xpose.msra.mxu0 %v554
    %574 = vmatprep.subr.bf16.mxu0 0
    %575 = vmatpush1.bf16.xpose.msra.mxu0 %v553
    %576 = vmatprep.subr.bf16.mxu0 0
    %577 = vmatpush1.bf16.xpose.msra.mxu0 %v552
    %578 = vmatprep.subr.bf16.mxu0 0
    %579 = vmatpush1.bf16.xpose.msra.mxu0 %v551
    %580 = vmatprep.subr.bf16.mxu0 0
    %581 = vmatpush1.bf16.xpose.msra.mxu0 %v550
    %582 = vmatprep.subr.bf16.mxu0 0
    %583 = vmatpush2.bf16.xpose.msra.mxu0 0
    %584 = vmatprep.subr.bf16.mxu0 0
    %585 = vmatpush2.bf16.xpose.msra.mxu0 0
    %586 = vmatprep.subr.bf16.mxu0 0
    %587 = vmatpush2.bf16.xpose.msra.mxu0 0
    %588 = vmatprep.subr.bf16.mxu0 0
    %589 = vmatpush2.bf16.xpose.msra.mxu0 0
    %590 = vmatprep.subr.bf16.mxu0 0
    %591 = vmatpush2.bf16.xpose.msra.mxu0 0
    %592 = vmatprep.subr.bf16.mxu0 0
    %593 = vmatpush2.bf16.xpose.msra.mxu0 0
    %594 = vmatprep.subr.bf16.mxu0 0
    %595 = vmatpush2.bf16.xpose.msra.mxu0 0
    %596 = vmatprep.subr.bf16.mxu0 0
    %597 = vmatpush2.bf16.xpose.msra.mxu0 0
    %598 = vmatprep.mubr.bf16.mxu0 0
    %599 = vmatmul.mubr.bf16.gmra.mxu0 %v427
    %v600 = vpop.f32.mrf.mxu0
    %v601 = vadd.f32 %v512, %v600
    %v602 = vpop.f32.mrf.mxu0
    %v603 = vpop.f32.mrf.mxu0
    %v604 = vadd.f32 %v515, %v603
    %v605 = vpop.f32.mrf.mxu0
    %606 = vdwg.mxu0
    %v607 = vld [vmem:[%s2] sm:$0xff]
    %v608 = vld [vmem:[%s2 + $0x8] sm:$0xff]
    %v609 = vld [vmem:[%s3] sm:$0xff]
    %v610 = vld [vmem:[%s3 + $0x8] sm:$0xff]
    %v611 = vsub.f32 0.0, %v609
    %v612 = vsub.f32 0.0, %v610
    %v613 = vadd.f32 %v607, 1e-06
    %v614 = vadd.f32 %v608, 1e-06
    %v615 = vrcp.pop %v613
    %v616 = vrcp.pop %v614
    %618 = vset.pattern.permute.xlu0 0
    %619 = vperm.xlu0 %618, %v615
    %v620 = vpop.permute.xlu0 %619
    %623 = vset.pattern.permute.xlu0 0
    %624 = vperm.xlu0 %623, %v616
    %v625 = vpop.permute.xlu0 %624
    %v627 = vmul.f32 %v601, %v620
    %v628 = vmul.f32 %v604, %v625
    %v629 = vmax.f32 %v627, 0.8
    %v630 = vmax.f32 %v628, 0.8
    %v631 = vmin.f32 %v629, 1.2
    %v632 = vmin.f32 %v630, 1.2
    %634 = vset.pattern.permute.xlu0 0
    %635 = vperm.xlu0 %634, %v611
    %v636 = vpop.permute.xlu0 %635
    %639 = vset.pattern.permute.xlu0 0
    %640 = vperm.xlu0 %639, %v612
    %v641 = vpop.permute.xlu0 %640
    %v643 = vmul.f32 %v627, %v636
    %v644 = vmul.f32 %v628, %v641
    %v645 = vmul.f32 %v631, %v636
    %v646 = vmul.f32 %v632, %v641
    %v647 = vmax.f32 %v643, %v645
    %v648 = vmax.f32 %v644, %v646
    %v649 = vadd.f32 %v647, %v648
    // Predicated region
    $region26: #{tpu_custom_call.1} parent=1 // pred_check
      %p650 = pneg %p33
    $region27: #{tpu_custom_call.1} parent=1 // pred_check_branch
      %652 = sbr.rel (%p650) target = $region29
    $region28: #{tpu_custom_call.1} parent=1 // pred_region
      %653 = vst [vmem:[#allocation7] sm:$0xff] 0.0
    $region29: #{tpu_custom_call.1} parent=1 // pred_fallthru
      _
    %v654 = vld [vmem:[#allocation7] sm:$0xff]
    %v655 = vadd.f32 %v654, %v649
    %656 = vst [vmem:[#allocation7] sm:$0xff] %v655
    // Predicated region
    $region30: #{tpu_custom_call.1} parent=1 // pred_check
      %p657 = pneg %p33
    $region31: #{tpu_custom_call.1} parent=1 // pred_check_branch
      %659 = sbr.rel (%p657) target = $region33
    $region32: #{tpu_custom_call.1} parent=1 // pred_region
      %s660 = smul.u32 0, 128
      %v661 = vlaneseq
      %v662 = vand.u32 %v661, 127
      %v663 = vstv %s660
      %v664 = vadd.s32 %v663, %v662
      %vm665 = vcmp.lt.s32.totalorder %v664, 8
      %v666 = vld [vmem:[#allocation7] sm:$0xff]
      %v667 = vsel %vm665, %v666, 0.0
      %668 = vst [vmem:[#allocation7] sm:$0xff] %v667
    $region33: #{tpu_custom_call.1} parent=1 // pred_fallthru
      _
    // Predicated region
    $region34: #{tpu_custom_call.1} parent=1 // pred_check
      _
    $region35: #{tpu_custom_call.1} parent=1 // pred_check_branch
      %670 = sbr.rel (0) target = $region37
    $region36: #{tpu_custom_call.1} parent=1 // pred_region
      %s672 = ssub.s32 128, 128
      %673 = vsyncadd [#allocation6], %s672
      %s675 = sshll.u32 [#allocation7], 4
      %s676 = int_to_ptr.vmem [resolvable:$true] %s675
      %678 = dma.vmem_to_hbm [thread:$0]  %s676, 128, %s4, [#allocation6]
    $region37: #{tpu_custom_call.1} parent=1 // pred_fallthru
      _
    // Predicated region
    $region38: #{tpu_custom_call.1} parent=1 // pred_check
      _
    $region39: #{tpu_custom_call.1} parent=1 // pred_check_branch
      %680 = sbr.rel (0) target = $region41
    $region40: #{tpu_custom_call.1} parent=1 // pred_region
      %681 = dma.done [#allocation6], 128
    $region41: #{tpu_custom_call.1} parent=1 // pred_fallthru
      _
    %682 = vsyncpa [#allocation5], 1
    %683 = vsyncpa [#allocation6], 1

</llo_original>
